<compile_context>
chip_gen: v5e
topology: v5e:2x2
jax: 0.10.0
libtpu: 0.0.40
codegen_flags: <defaults>
</compile_context>

<pallas_src>
import functools

import jax
import jax.numpy as jnp
from jax.experimental import pallas as pl
from jax.experimental.pallas import tpu as pltpu


def _fm_phase1_kernel(xT_ref, emb_catT_ref, w_ref, b_ref,
                      ssq_ref, sss_ref, lin_ref, max_ref, *, b_actual):
    """Per batch-tile: embedding sums, linear term, running global maxes."""
    i = pl.program_id(0)
    xT = xT_ref[...]                              # (n_slots, tile_b) int32, batch on lanes
    n_slots, tile_b = xT.shape
    two_k, vocab = emb_catT_ref.shape
    k = two_k // 2

    # count^T[v, b] = #{ j : x[b, j] == v }.  Built slot-by-slot so the peak
    # intermediate is (vocab, tile_b); no (B, N, V) one-hot is ever materialized.
    vocab_iota = jax.lax.broadcasted_iota(jnp.int32, (vocab, tile_b), 0)
    countT = jnp.zeros((vocab, tile_b), jnp.float32)
    for j in range(n_slots):                      # static unroll (n_slots is small)
        countT = countT + (xT[j:j + 1, :] == vocab_iota).astype(jnp.float32)

    # One fused MXU pass: [emb | emb^2]^T (2K, V) @ count^T (V, TB) -> (2K, TB).
    res = jnp.dot(emb_catT_ref[...], countT, preferred_element_type=jnp.float32)
    sum_embT = res[:k, :]                         # (K, TB) = sum_j emb[x[b, j], :]
    sum_sqT = res[k:, :]                          # (K, TB) = sum_j emb[x[b, j], :] ** 2
    sq_of_sumT = sum_embT * sum_embT              # (K, TB)

    # Row-wise reductions over K (sublane reduce) -> lane-dense (1, TB) rows.
    ssq_ref[...] = jnp.sum(sq_of_sumT, axis=0, keepdims=True)
    sss_ref[...] = jnp.sum(sum_sqT, axis=0, keepdims=True)

    # Linear(num_inputs -> 1): VPU multiply + sublane reduce (no 1-column matmul).
    lin_ref[...] = (jnp.sum(xT.astype(jnp.float32) * w_ref[...],
                            axis=0, keepdims=True) + b_ref[0, 0])

    # Running *global* max of square_of_sum / sum_of_square across batch tiles.
    # Padded batch lanes are masked with 0.0 (both tensors are >= 0, so this is
    # max-neutral, as are the zero-padded factor rows).
    lane = jax.lax.broadcasted_iota(jnp.int32, (k, tile_b), 1)
    valid = (i * tile_b + lane) < b_actual
    m_sq = jnp.max(jnp.where(valid, sq_of_sumT, 0.0), axis=1, keepdims=True)
    m_sq = jnp.max(m_sq, axis=0, keepdims=True)                      # (1, 1)
    m_ss = jnp.max(jnp.where(valid, sum_sqT, 0.0), axis=1, keepdims=True)
    m_ss = jnp.max(m_ss, axis=0, keepdims=True)                      # (1, 1)
    cur = jnp.concatenate([jnp.broadcast_to(m_sq, (1, 128)),
                           jnp.broadcast_to(m_ss, (1, 128))], axis=0)  # (2, 128)

    @pl.when(i == 0)
    def _():
        max_ref[...] = cur

    @pl.when(i > 0)
    def _():
        max_ref[...] = jnp.maximum(max_ref[...], cur)


def _fm_phase2_kernel(max_ref, ssq_ref, sss_ref, lin_ref, out_ref):
    """Normalize by the global maxes, add the linear term, sigmoid, lane-dense store."""
    # One scalar reciprocal per tensor instead of B*K element divides.
    r_sq = 1.0 / max_ref[0, 0]
    r_ss = 1.0 / max_ref[1, 0]
    inter = 0.5 * (ssq_ref[...] * r_sq - sss_ref[...] * r_ss)        # (1, TILE_B)
    out_ref[...] = jax.nn.sigmoid(lin_ref[...] + inter)              # lane-dense store


def fm_forward(x, emb, lin_w, lin_b, *, max_tile_b=512):
    """x:(B,N) int32 indices, emb:(N,K) f32, lin_w:(N,1) f32, lin_b:(1,1) f32 -> (B,) f32."""
    B, N = x.shape
    K = emb.shape[1]

    # Pad the factor dim to a multiple of 8 so the fused matmul result splits on an
    # (8, 128) tile boundary.  Zero columns are neutral for the sums and the maxes.
    k_pad = ((K + 7) // 8) * 8
    if k_pad != K:
        emb = jnp.pad(emb, ((0, 0), (0, k_pad - K)))
    emb_catT = jnp.concatenate([emb, emb * emb], axis=1).T           # (2*k_pad, N)

    # Batch tiling: one tile for small B, else 512-row tiles (multiple of 128 so
    # blocked lane dims stay aligned); pad batch (with index 0) up to a tile multiple.
    if B <= max_tile_b:
        tile_b, grid_b, b_pad = B, 1, B
    else:
        tile_b = max_tile_b
        grid_b = (B + tile_b - 1) // tile_b
        b_pad = grid_b * tile_b
        x = jnp.pad(x, ((0, b_pad - B), (0, 0)))
    xT = x.T                                                         # (N, b_pad), batch on lanes

    # Explicit VMEM budget: 32 MiB is plenty for these tiles and safe on v5e/v6e/v7x
    # (raise on v6e / re-derive for v7x's 64 MiB physical VMEM when enlarging tiles).
    vmem_limit = 32 * 1024 * 1024

    # ---- Pass 1: per-tile sums + linear + running global max ("arbitrary" grid) ----
    ssq, sss, lin, maxes = pl.pallas_call(
        functools.partial(_fm_phase1_kernel, b_actual=B),
        grid=(grid_b,),
        in_specs=[
            pl.BlockSpec((N, tile_b), lambda i: (0, i)),             # x^T batch tile
            pl.BlockSpec((2 * k_pad, N), lambda i: (0, 0)),          # [emb | emb^2]^T (resident)
            pl.BlockSpec((N, 1), lambda i: (0, 0)),                  # linear weight (resident)
            pl.BlockSpec(memory_space=pltpu.MemorySpace.SMEM),       # linear bias scalar
        ],
        out_specs=[
            pl.BlockSpec((1, tile_b), lambda i: (0, i)),             # sum_k square_of_sum
            pl.BlockSpec((1, tile_b), lambda i: (0, i)),             # sum_k sum_of_square
            pl.BlockSpec((1, tile_b), lambda i: (0, i)),             # linear term
            pl.BlockSpec((2, 128), lambda i: (0, 0)),                # running global maxes (acc)
        ],
        out_shape=[
            jax.ShapeDtypeStruct((1, b_pad), jnp.float32),
            jax.ShapeDtypeStruct((1, b_pad), jnp.float32),
            jax.ShapeDtypeStruct((1, b_pad), jnp.float32),
            jax.ShapeDtypeStruct((2, 128), jnp.float32),
        ],
        compiler_params=pltpu.CompilerParams(
            dimension_semantics=("arbitrary",),      # running-max accumulator across tiles
            vmem_limit_bytes=vmem_limit),
    )(xT, emb_catT, lin_w, lin_b)

    # ---- Pass 2: normalize + sigmoid, lane-dense output ("parallel" grid) ----
    out = pl.pallas_call(
        _fm_phase2_kernel,
        grid=(grid_b,),
        in_specs=[
            pl.BlockSpec(memory_space=pltpu.MemorySpace.SMEM),       # global maxes
            pl.BlockSpec((1, tile_b), lambda i: (0, i)),
            pl.BlockSpec((1, tile_b), lambda i: (0, i)),
            pl.BlockSpec((1, tile_b), lambda i: (0, i)),
        ],
        out_specs=pl.BlockSpec((1, tile_b), lambda i: (0, i)),
        out_shape=jax.ShapeDtypeStruct((1, b_pad), jnp.float32),
        compiler_params=pltpu.CompilerParams(
            dimension_semantics=("parallel",),       # independent batch tiles (megacore OK)
            vmem_limit_bytes=vmem_limit),
    )(maxes, ssq, sss, lin)

    return out[0, :B]                                                # squeeze(dim=1)


def fm_reference(x, emb, lin_w, lin_b):
    """Plain-JAX mirror of the PyTorch forward (direct gather)."""
    gen_out = emb[x]                                                 # (B, N, K)
    square_of_sum = jnp.sum(gen_out, axis=1) ** 2
    sum_of_square = jnp.sum(gen_out ** 2, axis=1)
    inter = 0.5 * jnp.sum(
        square_of_sum / jnp.max(square_of_sum)
        - sum_of_square / jnp.max(sum_of_square),
        axis=1, keepdims=True)
    lin = x.astype(jnp.float32) @ lin_w + lin_b[0, 0]
    return jax.nn.sigmoid(lin + inter)[:, 0]


if __name__ == "__main__":
    # field_dims -> num_inputs = sum(field_dims)
    field_dims = [8, 8, 16]
    num_inputs = int(sum(field_dims))    # 32
    fact_num = 16
    batch = 8

    key = jax.random.PRNGKey(0)
    k_x, k_emb, k_w, k_b = jax.random.split(key, 4)

    x = jax.random.randint(k_x, (batch, num_inputs), 0, num_inputs, dtype=jnp.int32)
    emb = jax.random.normal(k_emb, (num_inputs, fact_num), dtype=jnp.float32)
    lin_w = jax.random.normal(k_w, (num_inputs, 1), dtype=jnp.float32) * 0.1
    lin_b = jax.random.normal(k_b, (1, 1), dtype=jnp.float32)

    out = fm_forward(x, emb, lin_w, lin_b)
    jax.block_until_ready(out)

    ref = fm_reference(x, emb, lin_w, lin_b)
    assert out.shape == (batch,)
    assert jnp.allclose(out, ref, atol=1e-4, rtol=1e-4), (out, ref)

    print("KERNEL_OK")
</pallas_src>

<mosaic_0001>
module attributes {stable_mosaic.version = 11 : i64} {
  func.func @_fm_phase1_kernel(%arg0: i32, %arg1: memref<32x8xi32, #tpu.memory_space<vmem>>, %arg2: memref<32x32xf32, #tpu.memory_space<vmem>>, %arg3: memref<32x1xf32, #tpu.memory_space<vmem>>, %arg4: memref<1x1xf32, #tpu.memory_space<smem>>, %arg5: memref<1x8xf32, #tpu.memory_space<vmem>>, %arg6: memref<1x8xf32, #tpu.memory_space<vmem>>, %arg7: memref<1x8xf32, #tpu.memory_space<vmem>>, %arg8: memref<2x128xf32, #tpu.memory_space<vmem>>) attributes {dimension_semantics = [#tpu.dimension_semantics<arbitrary>], iteration_bounds = array<i64: 1>, scalar_prefetch = 0 : i64, scratch_operands = 0 : i64, tpu.core_type = #tpu.core_type<tc>, window_params = [{transform_indices = @transform_0, window_bounds = array<i64: 32, 8>}, {pipeline_mode = #tpu.pipeline_mode<synchronous>, transform_indices = @transform_1, window_bounds = array<i64: 32, 32>}, {pipeline_mode = #tpu.pipeline_mode<synchronous>, transform_indices = @transform_2, window_bounds = array<i64: 32, 1>}, {transform_indices = @transform_3, window_bounds = array<i64: 1, 1>}, {transform_indices = @transform_4, window_bounds = array<i64: 1, 8>}, {transform_indices = @transform_5, window_bounds = array<i64: 1, 8>}, {transform_indices = @transform_6, window_bounds = array<i64: 1, 8>}, {pipeline_mode = #tpu.pipeline_mode<synchronous>, transform_indices = @transform_7, window_bounds = array<i64: 2, 128>}]} {
    %c0 = arith.constant 0 : index
    %c0_0 = arith.constant 0 : index
    %0 = vector.load %arg1[%c0, %c0_0] : memref<32x8xi32, #tpu.memory_space<vmem>>, vector<32x8xi32>
    %1 = tpu.iota {dimensions = array<i32: 0>} : vector<32x8xi32>
    %cst = arith.constant 0.000000e+00 : f32
    %2 = vector.broadcast %cst : f32 to vector<32x8xf32>
    %3 = vector.extract_strided_slice %0 {offsets = [0, 0], sizes = [1, 8], strides = [1, 1]} : vector<32x8xi32> to vector<1x8xi32>
    %4 = vector.broadcast %3 : vector<1x8xi32> to vector<32x8xi32>
    %5 = arith.cmpi eq, %4, %1 : vector<32x8xi32>
    %6 = arith.extui %5 : vector<32x8xi1> to vector<32x8xi32>
    %7 = arith.sitofp %6 : vector<32x8xi32> to vector<32x8xf32>
    %8 = arith.addf %2, %7 : vector<32x8xf32>
    %9 = vector.extract_strided_slice %0 {offsets = [1, 0], sizes = [1, 8], strides = [1, 1]} : vector<32x8xi32> to vector<1x8xi32>
    %10 = vector.broadcast %9 : vector<1x8xi32> to vector<32x8xi32>
    %11 = arith.cmpi eq, %10, %1 : vector<32x8xi32>
    %12 = arith.extui %11 : vector<32x8xi1> to vector<32x8xi32>
    %13 = arith.sitofp %12 : vector<32x8xi32> to vector<32x8xf32>
    %14 = arith.addf %8, %13 : vector<32x8xf32>
    %15 = vector.extract_strided_slice %0 {offsets = [2, 0], sizes = [1, 8], strides = [1, 1]} : vector<32x8xi32> to vector<1x8xi32>
    %16 = vector.broadcast %15 : vector<1x8xi32> to vector<32x8xi32>
    %17 = arith.cmpi eq, %16, %1 : vector<32x8xi32>
    %18 = arith.extui %17 : vector<32x8xi1> to vector<32x8xi32>
    %19 = arith.sitofp %18 : vector<32x8xi32> to vector<32x8xf32>
    %20 = arith.addf %14, %19 : vector<32x8xf32>
    %21 = vector.extract_strided_slice %0 {offsets = [3, 0], sizes = [1, 8], strides = [1, 1]} : vector<32x8xi32> to vector<1x8xi32>
    %22 = vector.broadcast %21 : vector<1x8xi32> to vector<32x8xi32>
    %23 = arith.cmpi eq, %22, %1 : vector<32x8xi32>
    %24 = arith.extui %23 : vector<32x8xi1> to vector<32x8xi32>
    %25 = arith.sitofp %24 : vector<32x8xi32> to vector<32x8xf32>
    %26 = arith.addf %20, %25 : vector<32x8xf32>
    %27 = vector.extract_strided_slice %0 {offsets = [4, 0], sizes = [1, 8], strides = [1, 1]} : vector<32x8xi32> to vector<1x8xi32>
    %28 = vector.broadcast %27 : vector<1x8xi32> to vector<32x8xi32>
    %29 = arith.cmpi eq, %28, %1 : vector<32x8xi32>
    %30 = arith.extui %29 : vector<32x8xi1> to vector<32x8xi32>
    %31 = arith.sitofp %30 : vector<32x8xi32> to vector<32x8xf32>
    %32 = arith.addf %26, %31 : vector<32x8xf32>
    %33 = vector.extract_strided_slice %0 {offsets = [5, 0], sizes = [1, 8], strides = [1, 1]} : vector<32x8xi32> to vector<1x8xi32>
    %34 = vector.broadcast %33 : vector<1x8xi32> to vector<32x8xi32>
    %35 = arith.cmpi eq, %34, %1 : vector<32x8xi32>
    %36 = arith.extui %35 : vector<32x8xi1> to vector<32x8xi32>
    %37 = arith.sitofp %36 : vector<32x8xi32> to vector<32x8xf32>
    %38 = arith.addf %32, %37 : vector<32x8xf32>
    %39 = vector.extract_strided_slice %0 {offsets = [6, 0], sizes = [1, 8], strides = [1, 1]} : vector<32x8xi32> to vector<1x8xi32>
    %40 = vector.broadcast %39 : vector<1x8xi32> to vector<32x8xi32>
    %41 = arith.cmpi eq, %40, %1 : vector<32x8xi32>
    %42 = arith.extui %41 : vector<32x8xi1> to vector<32x8xi32>
    %43 = arith.sitofp %42 : vector<32x8xi32> to vector<32x8xf32>
    %44 = arith.addf %38, %43 : vector<32x8xf32>
    %45 = vector.extract_strided_slice %0 {offsets = [7, 0], sizes = [1, 8], strides = [1, 1]} : vector<32x8xi32> to vector<1x8xi32>
    %46 = vector.broadcast %45 : vector<1x8xi32> to vector<32x8xi32>
    %47 = arith.cmpi eq, %46, %1 : vector<32x8xi32>
    %48 = arith.extui %47 : vector<32x8xi1> to vector<32x8xi32>
    %49 = arith.sitofp %48 : vector<32x8xi32> to vector<32x8xf32>
    %50 = arith.addf %44, %49 : vector<32x8xf32>
    %51 = vector.extract_strided_slice %0 {offsets = [8, 0], sizes = [1, 8], strides = [1, 1]} : vector<32x8xi32> to vector<1x8xi32>
    %52 = vector.broadcast %51 : vector<1x8xi32> to vector<32x8xi32>
    %53 = arith.cmpi eq, %52, %1 : vector<32x8xi32>
    %54 = arith.extui %53 : vector<32x8xi1> to vector<32x8xi32>
    %55 = arith.sitofp %54 : vector<32x8xi32> to vector<32x8xf32>
    %56 = arith.addf %50, %55 : vector<32x8xf32>
    %57 = vector.extract_strided_slice %0 {offsets = [9, 0], sizes = [1, 8], strides = [1, 1]} : vector<32x8xi32> to vector<1x8xi32>
    %58 = vector.broadcast %57 : vector<1x8xi32> to vector<32x8xi32>
    %59 = arith.cmpi eq, %58, %1 : vector<32x8xi32>
    %60 = arith.extui %59 : vector<32x8xi1> to vector<32x8xi32>
    %61 = arith.sitofp %60 : vector<32x8xi32> to vector<32x8xf32>
    %62 = arith.addf %56, %61 : vector<32x8xf32>
    %63 = vector.extract_strided_slice %0 {offsets = [10, 0], sizes = [1, 8], strides = [1, 1]} : vector<32x8xi32> to vector<1x8xi32>
    %64 = vector.broadcast %63 : vector<1x8xi32> to vector<32x8xi32>
    %65 = arith.cmpi eq, %64, %1 : vector<32x8xi32>
    %66 = arith.extui %65 : vector<32x8xi1> to vector<32x8xi32>
    %67 = arith.sitofp %66 : vector<32x8xi32> to vector<32x8xf32>
    %68 = arith.addf %62, %67 : vector<32x8xf32>
    %69 = vector.extract_strided_slice %0 {offsets = [11, 0], sizes = [1, 8], strides = [1, 1]} : vector<32x8xi32> to vector<1x8xi32>
    %70 = vector.broadcast %69 : vector<1x8xi32> to vector<32x8xi32>
    %71 = arith.cmpi eq, %70, %1 : vector<32x8xi32>
    %72 = arith.extui %71 : vector<32x8xi1> to vector<32x8xi32>
    %73 = arith.sitofp %72 : vector<32x8xi32> to vector<32x8xf32>
    %74 = arith.addf %68, %73 : vector<32x8xf32>
    %75 = vector.extract_strided_slice %0 {offsets = [12, 0], sizes = [1, 8], strides = [1, 1]} : vector<32x8xi32> to vector<1x8xi32>
    %76 = vector.broadcast %75 : vector<1x8xi32> to vector<32x8xi32>
    %77 = arith.cmpi eq, %76, %1 : vector<32x8xi32>
    %78 = arith.extui %77 : vector<32x8xi1> to vector<32x8xi32>
    %79 = arith.sitofp %78 : vector<32x8xi32> to vector<32x8xf32>
    %80 = arith.addf %74, %79 : vector<32x8xf32>
    %81 = vector.extract_strided_slice %0 {offsets = [13, 0], sizes = [1, 8], strides = [1, 1]} : vector<32x8xi32> to vector<1x8xi32>
    %82 = vector.broadcast %81 : vector<1x8xi32> to vector<32x8xi32>
    %83 = arith.cmpi eq, %82, %1 : vector<32x8xi32>
    %84 = arith.extui %83 : vector<32x8xi1> to vector<32x8xi32>
    %85 = arith.sitofp %84 : vector<32x8xi32> to vector<32x8xf32>
    %86 = arith.addf %80, %85 : vector<32x8xf32>
    %87 = vector.extract_strided_slice %0 {offsets = [14, 0], sizes = [1, 8], strides = [1, 1]} : vector<32x8xi32> to vector<1x8xi32>
    %88 = vector.broadcast %87 : vector<1x8xi32> to vector<32x8xi32>
    %89 = arith.cmpi eq, %88, %1 : vector<32x8xi32>
    %90 = arith.extui %89 : vector<32x8xi1> to vector<32x8xi32>
    %91 = arith.sitofp %90 : vector<32x8xi32> to vector<32x8xf32>
    %92 = arith.addf %86, %91 : vector<32x8xf32>
    %93 = vector.extract_strided_slice %0 {offsets = [15, 0], sizes = [1, 8], strides = [1, 1]} : vector<32x8xi32> to vector<1x8xi32>
    %94 = vector.broadcast %93 : vector<1x8xi32> to vector<32x8xi32>
    %95 = arith.cmpi eq, %94, %1 : vector<32x8xi32>
    %96 = arith.extui %95 : vector<32x8xi1> to vector<32x8xi32>
    %97 = arith.sitofp %96 : vector<32x8xi32> to vector<32x8xf32>
    %98 = arith.addf %92, %97 : vector<32x8xf32>
    %99 = vector.extract_strided_slice %0 {offsets = [16, 0], sizes = [1, 8], strides = [1, 1]} : vector<32x8xi32> to vector<1x8xi32>
    %100 = vector.broadcast %99 : vector<1x8xi32> to vector<32x8xi32>
    %101 = arith.cmpi eq, %100, %1 : vector<32x8xi32>
    %102 = arith.extui %101 : vector<32x8xi1> to vector<32x8xi32>
    %103 = arith.sitofp %102 : vector<32x8xi32> to vector<32x8xf32>
    %104 = arith.addf %98, %103 : vector<32x8xf32>
    %105 = vector.extract_strided_slice %0 {offsets = [17, 0], sizes = [1, 8], strides = [1, 1]} : vector<32x8xi32> to vector<1x8xi32>
    %106 = vector.broadcast %105 : vector<1x8xi32> to vector<32x8xi32>
    %107 = arith.cmpi eq, %106, %1 : vector<32x8xi32>
    %108 = arith.extui %107 : vector<32x8xi1> to vector<32x8xi32>
    %109 = arith.sitofp %108 : vector<32x8xi32> to vector<32x8xf32>
    %110 = arith.addf %104, %109 : vector<32x8xf32>
    %111 = vector.extract_strided_slice %0 {offsets = [18, 0], sizes = [1, 8], strides = [1, 1]} : vector<32x8xi32> to vector<1x8xi32>
    %112 = vector.broadcast %111 : vector<1x8xi32> to vector<32x8xi32>
    %113 = arith.cmpi eq, %112, %1 : vector<32x8xi32>
    %114 = arith.extui %113 : vector<32x8xi1> to vector<32x8xi32>
    %115 = arith.sitofp %114 : vector<32x8xi32> to vector<32x8xf32>
    %116 = arith.addf %110, %115 : vector<32x8xf32>
    %117 = vector.extract_strided_slice %0 {offsets = [19, 0], sizes = [1, 8], strides = [1, 1]} : vector<32x8xi32> to vector<1x8xi32>
    %118 = vector.broadcast %117 : vector<1x8xi32> to vector<32x8xi32>
    %119 = arith.cmpi eq, %118, %1 : vector<32x8xi32>
    %120 = arith.extui %119 : vector<32x8xi1> to vector<32x8xi32>
    %121 = arith.sitofp %120 : vector<32x8xi32> to vector<32x8xf32>
    %122 = arith.addf %116, %121 : vector<32x8xf32>
    %123 = vector.extract_strided_slice %0 {offsets = [20, 0], sizes = [1, 8], strides = [1, 1]} : vector<32x8xi32> to vector<1x8xi32>
    %124 = vector.broadcast %123 : vector<1x8xi32> to vector<32x8xi32>
    %125 = arith.cmpi eq, %124, %1 : vector<32x8xi32>
    %126 = arith.extui %125 : vector<32x8xi1> to vector<32x8xi32>
    %127 = arith.sitofp %126 : vector<32x8xi32> to vector<32x8xf32>
    %128 = arith.addf %122, %127 : vector<32x8xf32>
    %129 = vector.extract_strided_slice %0 {offsets = [21, 0], sizes = [1, 8], strides = [1, 1]} : vector<32x8xi32> to vector<1x8xi32>
    %130 = vector.broadcast %129 : vector<1x8xi32> to vector<32x8xi32>
    %131 = arith.cmpi eq, %130, %1 : vector<32x8xi32>
    %132 = arith.extui %131 : vector<32x8xi1> to vector<32x8xi32>
    %133 = arith.sitofp %132 : vector<32x8xi32> to vector<32x8xf32>
    %134 = arith.addf %128, %133 : vector<32x8xf32>
    %135 = vector.extract_strided_slice %0 {offsets = [22, 0], sizes = [1, 8], strides = [1, 1]} : vector<32x8xi32> to vector<1x8xi32>
    %136 = vector.broadcast %135 : vector<1x8xi32> to vector<32x8xi32>
    %137 = arith.cmpi eq, %136, %1 : vector<32x8xi32>
    %138 = arith.extui %137 : vector<32x8xi1> to vector<32x8xi32>
    %139 = arith.sitofp %138 : vector<32x8xi32> to vector<32x8xf32>
    %140 = arith.addf %134, %139 : vector<32x8xf32>
    %141 = vector.extract_strided_slice %0 {offsets = [23, 0], sizes = [1, 8], strides = [1, 1]} : vector<32x8xi32> to vector<1x8xi32>
    %142 = vector.broadcast %141 : vector<1x8xi32> to vector<32x8xi32>
    %143 = arith.cmpi eq, %142, %1 : vector<32x8xi32>
    %144 = arith.extui %143 : vector<32x8xi1> to vector<32x8xi32>
    %145 = arith.sitofp %144 : vector<32x8xi32> to vector<32x8xf32>
    %146 = arith.addf %140, %145 : vector<32x8xf32>
    %147 = vector.extract_strided_slice %0 {offsets = [24, 0], sizes = [1, 8], strides = [1, 1]} : vector<32x8xi32> to vector<1x8xi32>
    %148 = vector.broadcast %147 : vector<1x8xi32> to vector<32x8xi32>
    %149 = arith.cmpi eq, %148, %1 : vector<32x8xi32>
    %150 = arith.extui %149 : vector<32x8xi1> to vector<32x8xi32>
    %151 = arith.sitofp %150 : vector<32x8xi32> to vector<32x8xf32>
    %152 = arith.addf %146, %151 : vector<32x8xf32>
    %153 = vector.extract_strided_slice %0 {offsets = [25, 0], sizes = [1, 8], strides = [1, 1]} : vector<32x8xi32> to vector<1x8xi32>
    %154 = vector.broadcast %153 : vector<1x8xi32> to vector<32x8xi32>
    %155 = arith.cmpi eq, %154, %1 : vector<32x8xi32>
    %156 = arith.extui %155 : vector<32x8xi1> to vector<32x8xi32>
    %157 = arith.sitofp %156 : vector<32x8xi32> to vector<32x8xf32>
    %158 = arith.addf %152, %157 : vector<32x8xf32>
    %159 = vector.extract_strided_slice %0 {offsets = [26, 0], sizes = [1, 8], strides = [1, 1]} : vector<32x8xi32> to vector<1x8xi32>
    %160 = vector.broadcast %159 : vector<1x8xi32> to vector<32x8xi32>
    %161 = arith.cmpi eq, %160, %1 : vector<32x8xi32>
    %162 = arith.extui %161 : vector<32x8xi1> to vector<32x8xi32>
    %163 = arith.sitofp %162 : vector<32x8xi32> to vector<32x8xf32>
    %164 = arith.addf %158, %163 : vector<32x8xf32>
    %165 = vector.extract_strided_slice %0 {offsets = [27, 0], sizes = [1, 8], strides = [1, 1]} : vector<32x8xi32> to vector<1x8xi32>
    %166 = vector.broadcast %165 : vector<1x8xi32> to vector<32x8xi32>
    %167 = arith.cmpi eq, %166, %1 : vector<32x8xi32>
    %168 = arith.extui %167 : vector<32x8xi1> to vector<32x8xi32>
    %169 = arith.sitofp %168 : vector<32x8xi32> to vector<32x8xf32>
    %170 = arith.addf %164, %169 : vector<32x8xf32>
    %171 = vector.extract_strided_slice %0 {offsets = [28, 0], sizes = [1, 8], strides = [1, 1]} : vector<32x8xi32> to vector<1x8xi32>
    %172 = vector.broadcast %171 : vector<1x8xi32> to vector<32x8xi32>
    %173 = arith.cmpi eq, %172, %1 : vector<32x8xi32>
    %174 = arith.extui %173 : vector<32x8xi1> to vector<32x8xi32>
    %175 = arith.sitofp %174 : vector<32x8xi32> to vector<32x8xf32>
    %176 = arith.addf %170, %175 : vector<32x8xf32>
    %177 = vector.extract_strided_slice %0 {offsets = [29, 0], sizes = [1, 8], strides = [1, 1]} : vector<32x8xi32> to vector<1x8xi32>
    %178 = vector.broadcast %177 : vector<1x8xi32> to vector<32x8xi32>
    %179 = arith.cmpi eq, %178, %1 : vector<32x8xi32>
    %180 = arith.extui %179 : vector<32x8xi1> to vector<32x8xi32>
    %181 = arith.sitofp %180 : vector<32x8xi32> to vector<32x8xf32>
    %182 = arith.addf %176, %181 : vector<32x8xf32>
    %183 = vector.extract_strided_slice %0 {offsets = [30, 0], sizes = [1, 8], strides = [1, 1]} : vector<32x8xi32> to vector<1x8xi32>
    %184 = vector.broadcast %183 : vector<1x8xi32> to vector<32x8xi32>
    %185 = arith.cmpi eq, %184, %1 : vector<32x8xi32>
    %186 = arith.extui %185 : vector<32x8xi1> to vector<32x8xi32>
    %187 = arith.sitofp %186 : vector<32x8xi32> to vector<32x8xf32>
    %188 = arith.addf %182, %187 : vector<32x8xf32>
    %189 = vector.extract_strided_slice %0 {offsets = [31, 0], sizes = [1, 8], strides = [1, 1]} : vector<32x8xi32> to vector<1x8xi32>
    %190 = vector.broadcast %189 : vector<1x8xi32> to vector<32x8xi32>
    %191 = arith.cmpi eq, %190, %1 : vector<32x8xi32>
    %192 = arith.extui %191 : vector<32x8xi1> to vector<32x8xi32>
    %193 = arith.sitofp %192 : vector<32x8xi32> to vector<32x8xf32>
    %194 = arith.addf %188, %193 : vector<32x8xf32>
    %c0_1 = arith.constant 0 : index
    %c0_2 = arith.constant 0 : index
    %195 = vector.load %arg2[%c0_1, %c0_2] : memref<32x32xf32, #tpu.memory_space<vmem>>, vector<32x32xf32>
    %cst_3 = arith.constant dense<0.000000e+00> : vector<32x8xf32>
    %196 = tpu.matmul %195, %194, %cst_3 {dimension_numbers = #tpu.dot_dimension_numbers<[1], [0], [0], [1], [0, 0, 1, 1], [], []>} : vector<32x32xf32>, vector<32x8xf32>, vector<32x8xf32> -> vector<32x8xf32>
    %197 = vector.extract_strided_slice %196 {offsets = [0, 0], sizes = [16, 8], strides = [1, 1]} : vector<32x8xf32> to vector<16x8xf32>
    %198 = vector.extract_strided_slice %196 {offsets = [16, 0], sizes = [16, 8], strides = [1, 1]} : vector<32x8xf32> to vector<16x8xf32>
    %199 = arith.mulf %197, %197 : vector<16x8xf32>
    %cst_4 = arith.constant dense<0.000000e+00> : vector<8xf32>
    %200 = vector.multi_reduction <add>, %199, %cst_4 [0] : vector<16x8xf32> to vector<8xf32>
    %201 = vector.shape_cast %200 : vector<8xf32> to vector<1x8xf32>
    %c0_5 = arith.constant 0 : index
    %c0_6 = arith.constant 0 : index
    %202 = vector.load %arg5[%c0_5, %c0_6] : memref<1x8xf32, #tpu.memory_space<vmem>>, vector<1x8xf32>
    tpu.vector_store %arg5[%c0_5, %c0_6], %201 {strides = array<i32>} : memref<1x8xf32, #tpu.memory_space<vmem>>, vector<1x8xf32>,
    %cst_7 = arith.constant dense<0.000000e+00> : vector<8xf32>
    %203 = vector.multi_reduction <add>, %198, %cst_7 [0] : vector<16x8xf32> to vector<8xf32>
    %204 = vector.shape_cast %203 : vector<8xf32> to vector<1x8xf32>
    %c0_8 = arith.constant 0 : index
    %c0_9 = arith.constant 0 : index
    %205 = vector.load %arg6[%c0_8, %c0_9] : memref<1x8xf32, #tpu.memory_space<vmem>>, vector<1x8xf32>
    tpu.vector_store %arg6[%c0_8, %c0_9], %204 {strides = array<i32>} : memref<1x8xf32, #tpu.memory_space<vmem>>, vector<1x8xf32>,
    %206 = arith.sitofp %0 : vector<32x8xi32> to vector<32x8xf32>
    %c0_10 = arith.constant 0 : index
    %c0_11 = arith.constant 0 : index
    %207 = vector.load %arg3[%c0_10, %c0_11] : memref<32x1xf32, #tpu.memory_space<vmem>>, vector<32x1xf32>
    %208 = vector.broadcast %207 : vector<32x1xf32> to vector<32x8xf32>
    %209 = arith.mulf %206, %208 : vector<32x8xf32>
    %cst_12 = arith.constant dense<0.000000e+00> : vector<8xf32>
    %210 = vector.multi_reduction <add>, %209, %cst_12 [0] : vector<32x8xf32> to vector<8xf32>
    %211 = vector.shape_cast %210 : vector<8xf32> to vector<1x8xf32>
    %c0_13 = arith.constant 0 : index
    %c0_14 = arith.constant 0 : index
    %212 = memref.load %arg4[%c0_13, %c0_14] : memref<1x1xf32, #tpu.memory_space<smem>>
    %213 = vector.broadcast %212 : f32 to vector<1x8xf32>
    %214 = arith.addf %211, %213 : vector<1x8xf32>
    %c0_15 = arith.constant 0 : index
    %c0_16 = arith.constant 0 : index
    %215 = vector.load %arg7[%c0_15, %c0_16] : memref<1x8xf32, #tpu.memory_space<vmem>>, vector<1x8xf32>
    tpu.vector_store %arg7[%c0_15, %c0_16], %214 {strides = array<i32>} : memref<1x8xf32, #tpu.memory_space<vmem>>, vector<1x8xf32>,
    %216 = tpu.iota {dimensions = array<i32: 1>} : vector<16x8xi32>
    %c8_i32 = arith.constant 8 : i32
    %217 = arith.muli %arg0, %c8_i32 : i32
    %218 = vector.broadcast %217 : i32 to vector<16x8xi32>
    %219 = arith.addi %218, %216 : vector<16x8xi32>
    %c8_i32_17 = arith.constant 8 : i32
    %220 = vector.broadcast %c8_i32_17 : i32 to vector<16x8xi32>
    %221 = arith.cmpi slt, %219, %220 : vector<16x8xi32>
    %cst_18 = arith.constant 0.000000e+00 : f32
    %222 = vector.broadcast %cst_18 : f32 to vector<16x8xf32>
    %223 = arith.select %221, %199, %222 : vector<16x8xi1>, vector<16x8xf32>
    %cst_19 = arith.constant dense<0xFF800000> : vector<16xf32>
    %224 = vector.multi_reduction <maximumf>, %223, %cst_19 [1] : vector<16x8xf32> to vector<16xf32>
    %225 = vector.shape_cast %224 : vector<16xf32> to vector<16x1xf32>
    %cst_20 = arith.constant dense<0xFF800000> : vector<1xf32>
    %226 = vector.multi_reduction <maximumf>, %225, %cst_20 [0] : vector<16x1xf32> to vector<1xf32>
    %227 = vector.shape_cast %226 : vector<1xf32> to vector<1x1xf32>
    %cst_21 = arith.constant 0.000000e+00 : f32
    %228 = vector.broadcast %cst_21 : f32 to vector<16x8xf32>
    %229 = arith.select %221, %198, %228 : vector<16x8xi1>, vector<16x8xf32>
    %cst_22 = arith.constant dense<0xFF800000> : vector<16xf32>
    %230 = vector.multi_reduction <maximumf>, %229, %cst_22 [1] : vector<16x8xf32> to vector<16xf32>
    %231 = vector.shape_cast %230 : vector<16xf32> to vector<16x1xf32>
    %cst_23 = arith.constant dense<0xFF800000> : vector<1xf32>
    %232 = vector.multi_reduction <maximumf>, %231, %cst_23 [0] : vector<16x1xf32> to vector<1xf32>
    %233 = vector.shape_cast %232 : vector<1xf32> to vector<1x1xf32>
    %234 = vector.shape_cast %227 : vector<1x1xf32> to vector<1x1xf32>
    %235 = vector.broadcast %234 : vector<1x1xf32> to vector<1x128xf32>
    %236 = vector.shape_cast %233 : vector<1x1xf32> to vector<1x1xf32>
    %237 = vector.broadcast %236 : vector<1x1xf32> to vector<1x128xf32>
    %238 = tpu.concatenate %235, %237 in 0 : vector<1x128xf32>, vector<1x128xf32> -> vector<2x128xf32>
    %c0_i32 = arith.constant 0 : i32
    %239 = arith.cmpi eq, %arg0, %c0_i32 : i32
    %240 = arith.extui %239 : i1 to i32
    %c0_i32_24 = arith.constant 0 : i32
    %241 = arith.cmpi ne, %240, %c0_i32_24 : i32
    scf.if %241 {
      %c0_27 = arith.constant 0 : index
      %c0_28 = arith.constant 0 : index
      %245 = vector.load %arg8[%c0_27, %c0_28] : memref<2x128xf32, #tpu.memory_space<vmem>>, vector<2x128xf32>
      tpu.vector_store %arg8[%c0_27, %c0_28], %238 {strides = array<i32>} : memref<2x128xf32, #tpu.memory_space<vmem>>, vector<2x128xf32>,
    } else {
    }
    %c0_i32_25 = arith.constant 0 : i32
    %242 = arith.cmpi sgt, %arg0, %c0_i32_25 : i32
    %243 = arith.extui %242 : i1 to i32
    %c0_i32_26 = arith.constant 0 : i32
    %244 = arith.cmpi ne, %243, %c0_i32_26 : i32
    scf.if %244 {
      %c0_27 = arith.constant 0 : index
      %c0_28 = arith.constant 0 : index
      %245 = vector.load %arg8[%c0_27, %c0_28] : memref<2x128xf32, #tpu.memory_space<vmem>>, vector<2x128xf32>
      %246 = arith.maximumf %245, %238 : vector<2x128xf32>
      %c0_29 = arith.constant 0 : index
      %c0_30 = arith.constant 0 : index
      %247 = vector.load %arg8[%c0_29, %c0_30] : memref<2x128xf32, #tpu.memory_space<vmem>>, vector<2x128xf32>
      tpu.vector_store %arg8[%c0_29, %c0_30], %246 {strides = array<i32>} : memref<2x128xf32, #tpu.memory_space<vmem>>, vector<2x128xf32>,
    } else {
    }
    return
  }
  func.func @transform_0(%arg0: i32) -> (i32, i32) {
    %c0_i32 = arith.constant 0 : i32
    %c0_i32_0 = arith.constant 0 : i32
    return %c0_i32, %arg0 : i32, i32
  }
  func.func @transform_1(%arg0: i32) -> (i32, i32) {
    %c0_i32 = arith.constant 0 : i32
    %c0_i32_0 = arith.constant 0 : i32
    %c0_i32_1 = arith.constant 0 : i32
    return %c0_i32, %c0_i32_0 : i32, i32
  }
  func.func @transform_2(%arg0: i32) -> (i32, i32) {
    %c0_i32 = arith.constant 0 : i32
    %c0_i32_0 = arith.constant 0 : i32
    %c0_i32_1 = arith.constant 0 : i32
    return %c0_i32, %c0_i32_0 : i32, i32
  }
  func.func @transform_3(%arg0: i32) -> (i32, i32) {
    %c0_i32 = arith.constant 0 : i32
    %c0_i32_0 = arith.constant 0 : i32
    %c0_i32_1 = arith.constant 0 : i32
    return %c0_i32, %c0_i32_0 : i32, i32
  }
  func.func @transform_4(%arg0: i32) -> (i32, i32) {
    %c0_i32 = arith.constant 0 : i32
    %c0_i32_0 = arith.constant 0 : i32
    return %c0_i32, %arg0 : i32, i32
  }
  func.func @transform_5(%arg0: i32) -> (i32, i32) {
    %c0_i32 = arith.constant 0 : i32
    %c0_i32_0 = arith.constant 0 : i32
    return %c0_i32, %arg0 : i32, i32
  }
  func.func @transform_6(%arg0: i32) -> (i32, i32) {
    %c0_i32 = arith.constant 0 : i32
    %c0_i32_0 = arith.constant 0 : i32
    return %c0_i32, %arg0 : i32, i32
  }
  func.func @transform_7(%arg0: i32) -> (i32, i32) {
    %c0_i32 = arith.constant 0 : i32
    %c0_i32_0 = arith.constant 0 : i32
    %c0_i32_1 = arith.constant 0 : i32
    return %c0_i32, %c0_i32_0 : i32, i32
  }
}

</mosaic_0001>

<llo_original>
// kernel: tpu_custom_call.1
$region0: #{tpu_custom_call.1}
  #allocation0 [shape = 'u32[]', space=smem, size = 0x4, offset = 0x4, fixed_abs, tag = 'smem constant byte address 0x4 - core index']
  #allocation1 [shape = 'u32[72,128]{1,0:T(1,128)}', space=vmem, size = 0x9000, scoped, tag = 'internal scratch']
  #allocation2 [shape = 'f32[1,1]{1,0:T(1,128)S(6)}', space=smem, size = 0x200, scoped, tag = 'scoped memory for tpu_custom_call.1']
  %s0 = inlined_call_operand.vmem [shape: s32[32,8], index: 0, kind: input, shape index: {}]
  %s1 = inlined_call_operand.vmem [shape: f32[32,32], index: 1, kind: input, shape index: {}]
  %s2 = inlined_call_operand.vmem [shape: f32[32,1], index: 2, kind: input, shape index: {}]
  %s3 = inlined_call_operand.<no memory space> [shape: f32[1,1], index: 3, kind: input, shape index: {}]
  %s4 = inlined_call_operand.hbm [shape: f32[1,8], index: 4, kind: output, shape index: {0}]
  %s5 = inlined_call_operand.hbm [shape: f32[1,8], index: 5, kind: output, shape index: {1}]
  %s6 = inlined_call_operand.hbm [shape: f32[1,8], index: 6, kind: output, shape index: {2}]
  %s7 = inlined_call_operand.hbm [shape: f32[2,128], index: 7, kind: output, shape index: {3}]
  %8 = xla_tuple %s4, %s5, %s6, %s7
  %s9 = sld [smem:[#allocation0]]
  $region58: #{tpu_custom_call.1} parent=0
    _
  %s11 = ssub.s32 1, %s9
  %s12 = scalar_select 0, %s11, %s9
  %13 = sst [smem:[#allocation2]] %s3
  $region1: #{tpu_custom_call.1} parent=0
    #allocation3 [shape = 'u8[512]{0}', space=vmem, size = 0x400, scoped, tag = 'output window, operand 0, single buffered']
    #allocation4 [shape = 's32[1]{0}', space=sflag, size = 0x4, scoped, tag = 'scoped memory for tpu_custom_call.1']
    #allocation5 [shape = 'u8[512]{0}', space=vmem, size = 0x400, scoped, tag = 'output window, operand 1, single buffered']
    #allocation6 [shape = 's32[1]{0}', space=sflag, size = 0x4, scoped, tag = 'scoped memory for tpu_custom_call.1']
    #allocation7 [shape = 'u8[512]{0}', space=vmem, size = 0x400, scoped, tag = 'output window, operand 2, single buffered']
    #allocation8 [shape = 'u8[1024]{0}', space=vmem, size = 0x400, scoped, tag = 'output window, operand 3, single buffered']
    #allocation9 [shape = 's32[1]{0}', space=sflag, size = 0x4, scoped, tag = 'scoped memory for tpu_custom_call.1']
    %14 = vsyncpa [#allocation4], 0
    %15 = vsyncpa [#allocation6], 0
    %16 = vsyncpa [#allocation9], 0
    // Predicated region
    $region2: #{tpu_custom_call.1} parent=1 // pred_check
      _
    $region3: #{tpu_custom_call.1} parent=1 // pred_check_branch
      %18 = sbr.rel (0) target = $region5
    $region4: #{tpu_custom_call.1} parent=1 // pred_region
      _
    $region5: #{tpu_custom_call.1} parent=1 // pred_fallthru
      _
    // Predicated region
    $region6: #{tpu_custom_call.1} parent=1 // pred_check
      _
    $region7: #{tpu_custom_call.1} parent=1 // pred_check_branch
      %20 = sbr.rel (0) target = $region9
    $region8: #{tpu_custom_call.1} parent=1 // pred_region
      _
    $region9: #{tpu_custom_call.1} parent=1 // pred_fallthru
      _
    // Predicated region
    $region10: #{tpu_custom_call.1} parent=1 // pred_check
      _
    $region11: #{tpu_custom_call.1} parent=1 // pred_check_branch
      %22 = sbr.rel (0) target = $region13
    $region12: #{tpu_custom_call.1} parent=1 // pred_region
      _
    $region13: #{tpu_custom_call.1} parent=1 // pred_fallthru
      _
    // Predicated region
    $region14: #{tpu_custom_call.1} parent=1 // pred_check
      _
    $region15: #{tpu_custom_call.1} parent=1 // pred_check_branch
      %24 = sbr.rel (0) target = $region17
    $region16: #{tpu_custom_call.1} parent=1 // pred_region
      _
    $region17: #{tpu_custom_call.1} parent=1 // pred_fallthru
      _
    %v25 = vld [vmem:[%s0] sm:$0xff]
    %v26 = vld [vmem:[%s0 + $0x8] sm:$0xff]
    %v27 = vld [vmem:[%s0 + $0x10] sm:$0xff]
    %v28 = vld [vmem:[%s0 + $0x18] sm:$0xff]
    %v29 = vlaneseq
    %v30 = vshrl.u32 %v29, 7
    %v31 = vadd.s32 %v30, 8
    %v32 = vadd.s32 %v30, 16
    %v33 = vadd.s32 %v30, 24
    %v34 = vperm.slane %v25, 0
    %vm35 = vcmp.eq.s32.totalorder %v34, %v30
    %vm36 = vcmp.eq.s32.totalorder %v34, %v31
    %vm37 = vcmp.eq.s32.totalorder %v34, %v32
    %vm38 = vcmp.eq.s32.totalorder %v34, %v33
    %v39 = vsel %vm35, 1, 0
    %v40 = vsel %vm36, 1, 0
    %v41 = vsel %vm37, 1, 0
    %v42 = vsel %vm38, 1, 0
    %v43 = vcvt.s32.f32 %v39
    %v44 = vcvt.s32.f32 %v40
    %v45 = vcvt.s32.f32 %v41
    %v46 = vcvt.s32.f32 %v42
    %v47 = vadd.f32 %v43, 0.0
    %v48 = vadd.f32 %v44, 0.0
    %v49 = vadd.f32 %v45, 0.0
    %v50 = vadd.f32 %v46, 0.0
    %v51 = vperm.slane %v25, 1
    %vm52 = vcmp.eq.s32.totalorder %v51, %v30
    %vm53 = vcmp.eq.s32.totalorder %v51, %v31
    %vm54 = vcmp.eq.s32.totalorder %v51, %v32
    %vm55 = vcmp.eq.s32.totalorder %v51, %v33
    %v56 = vsel %vm52, 1, 0
    %v57 = vsel %vm53, 1, 0
    %v58 = vsel %vm54, 1, 0
    %v59 = vsel %vm55, 1, 0
    %v60 = vcvt.s32.f32 %v56
    %v61 = vcvt.s32.f32 %v57
    %v62 = vcvt.s32.f32 %v58
    %v63 = vcvt.s32.f32 %v59
    %v64 = vadd.f32 %v47, %v60
    %v65 = vadd.f32 %v48, %v61
    %v66 = vadd.f32 %v49, %v62
    %v67 = vadd.f32 %v50, %v63
    %v68 = vperm.slane %v25, 2
    %vm69 = vcmp.eq.s32.totalorder %v68, %v30
    %vm70 = vcmp.eq.s32.totalorder %v68, %v31
    %vm71 = vcmp.eq.s32.totalorder %v68, %v32
    %vm72 = vcmp.eq.s32.totalorder %v68, %v33
    %v73 = vsel %vm69, 1, 0
    %v74 = vsel %vm70, 1, 0
    %v75 = vsel %vm71, 1, 0
    %v76 = vsel %vm72, 1, 0
    %v77 = vcvt.s32.f32 %v73
    %v78 = vcvt.s32.f32 %v74
    %v79 = vcvt.s32.f32 %v75
    %v80 = vcvt.s32.f32 %v76
    %v81 = vadd.f32 %v64, %v77
    %v82 = vadd.f32 %v65, %v78
    %v83 = vadd.f32 %v66, %v79
    %v84 = vadd.f32 %v67, %v80
    %v85 = vperm.slane %v25, 3
    %vm86 = vcmp.eq.s32.totalorder %v85, %v30
    %vm87 = vcmp.eq.s32.totalorder %v85, %v31
    %vm88 = vcmp.eq.s32.totalorder %v85, %v32
    %vm89 = vcmp.eq.s32.totalorder %v85, %v33
    %v90 = vsel %vm86, 1, 0
    %v91 = vsel %vm87, 1, 0
    %v92 = vsel %vm88, 1, 0
    %v93 = vsel %vm89, 1, 0
    %v94 = vcvt.s32.f32 %v90
    %v95 = vcvt.s32.f32 %v91
    %v96 = vcvt.s32.f32 %v92
    %v97 = vcvt.s32.f32 %v93
    %v98 = vadd.f32 %v81, %v94
    %v99 = vadd.f32 %v82, %v95
    %v100 = vadd.f32 %v83, %v96
    %v101 = vadd.f32 %v84, %v97
    %v102 = vperm.slane %v25, 4
    %vm103 = vcmp.eq.s32.totalorder %v102, %v30
    %vm104 = vcmp.eq.s32.totalorder %v102, %v31
    %vm105 = vcmp.eq.s32.totalorder %v102, %v32
    %vm106 = vcmp.eq.s32.totalorder %v102, %v33
    %v107 = vsel %vm103, 1, 0
    %v108 = vsel %vm104, 1, 0
    %v109 = vsel %vm105, 1, 0
    %v110 = vsel %vm106, 1, 0
    %v111 = vcvt.s32.f32 %v107
    %v112 = vcvt.s32.f32 %v108
    %v113 = vcvt.s32.f32 %v109
    %v114 = vcvt.s32.f32 %v110
    %v115 = vadd.f32 %v98, %v111
    %v116 = vadd.f32 %v99, %v112
    %v117 = vadd.f32 %v100, %v113
    %v118 = vadd.f32 %v101, %v114
    %v119 = vperm.slane %v25, 5
    %vm120 = vcmp.eq.s32.totalorder %v119, %v30
    %vm121 = vcmp.eq.s32.totalorder %v119, %v31
    %vm122 = vcmp.eq.s32.totalorder %v119, %v32
    %vm123 = vcmp.eq.s32.totalorder %v119, %v33
    %v124 = vsel %vm120, 1, 0
    %v125 = vsel %vm121, 1, 0
    %v126 = vsel %vm122, 1, 0
    %v127 = vsel %vm123, 1, 0
    %v128 = vcvt.s32.f32 %v124
    %v129 = vcvt.s32.f32 %v125
    %v130 = vcvt.s32.f32 %v126
    %v131 = vcvt.s32.f32 %v127
    %v132 = vadd.f32 %v115, %v128
    %v133 = vadd.f32 %v116, %v129
    %v134 = vadd.f32 %v117, %v130
    %v135 = vadd.f32 %v118, %v131
    %v136 = vperm.slane %v25, 6
    %vm137 = vcmp.eq.s32.totalorder %v136, %v30
    %vm138 = vcmp.eq.s32.totalorder %v136, %v31
    %vm139 = vcmp.eq.s32.totalorder %v136, %v32
    %vm140 = vcmp.eq.s32.totalorder %v136, %v33
    %v141 = vsel %vm137, 1, 0
    %v142 = vsel %vm138, 1, 0
    %v143 = vsel %vm139, 1, 0
    %v144 = vsel %vm140, 1, 0
    %v145 = vcvt.s32.f32 %v141
    %v146 = vcvt.s32.f32 %v142
    %v147 = vcvt.s32.f32 %v143
    %v148 = vcvt.s32.f32 %v144
    %v149 = vadd.f32 %v132, %v145
    %v150 = vadd.f32 %v133, %v146
    %v151 = vadd.f32 %v134, %v147
    %v152 = vadd.f32 %v135, %v148
    %v153 = vperm.slane %v25, 7
    %vm154 = vcmp.eq.s32.totalorder %v153, %v30
    %vm155 = vcmp.eq.s32.totalorder %v153, %v31
    %vm156 = vcmp.eq.s32.totalorder %v153, %v32
    %vm157 = vcmp.eq.s32.totalorder %v153, %v33
    %v158 = vsel %vm154, 1, 0
    %v159 = vsel %vm155, 1, 0
    %v160 = vsel %vm156, 1, 0
    %v161 = vsel %vm157, 1, 0
    %v162 = vcvt.s32.f32 %v158
    %v163 = vcvt.s32.f32 %v159
    %v164 = vcvt.s32.f32 %v160
    %v165 = vcvt.s32.f32 %v161
    %v166 = vadd.f32 %v149, %v162
    %v167 = vadd.f32 %v150, %v163
    %v168 = vadd.f32 %v151, %v164
    %v169 = vadd.f32 %v152, %v165
    %v170 = vperm.slane %v26, 0
    %vm171 = vcmp.eq.s32.totalorder %v170, %v30
    %vm172 = vcmp.eq.s32.totalorder %v170, %v31
    %vm173 = vcmp.eq.s32.totalorder %v170, %v32
    %vm174 = vcmp.eq.s32.totalorder %v170, %v33
    %v175 = vsel %vm171, 1, 0
    %v176 = vsel %vm172, 1, 0
    %v177 = vsel %vm173, 1, 0
    %v178 = vsel %vm174, 1, 0
    %v179 = vcvt.s32.f32 %v175
    %v180 = vcvt.s32.f32 %v176
    %v181 = vcvt.s32.f32 %v177
    %v182 = vcvt.s32.f32 %v178
    %v183 = vadd.f32 %v166, %v179
    %v184 = vadd.f32 %v167, %v180
    %v185 = vadd.f32 %v168, %v181
    %v186 = vadd.f32 %v169, %v182
    %v187 = vperm.slane %v26, 1
    %vm188 = vcmp.eq.s32.totalorder %v187, %v30
    %vm189 = vcmp.eq.s32.totalorder %v187, %v31
    %vm190 = vcmp.eq.s32.totalorder %v187, %v32
    %vm191 = vcmp.eq.s32.totalorder %v187, %v33
    %v192 = vsel %vm188, 1, 0
    %v193 = vsel %vm189, 1, 0
    %v194 = vsel %vm190, 1, 0
    %v195 = vsel %vm191, 1, 0
    %v196 = vcvt.s32.f32 %v192
    %v197 = vcvt.s32.f32 %v193
    %v198 = vcvt.s32.f32 %v194
    %v199 = vcvt.s32.f32 %v195
    %v200 = vadd.f32 %v183, %v196
    %v201 = vadd.f32 %v184, %v197
    %v202 = vadd.f32 %v185, %v198
    %v203 = vadd.f32 %v186, %v199
    %v204 = vperm.slane %v26, 2
    %vm205 = vcmp.eq.s32.totalorder %v204, %v30
    %vm206 = vcmp.eq.s32.totalorder %v204, %v31
    %vm207 = vcmp.eq.s32.totalorder %v204, %v32
    %vm208 = vcmp.eq.s32.totalorder %v204, %v33
    %v209 = vsel %vm205, 1, 0
    %v210 = vsel %vm206, 1, 0
    %v211 = vsel %vm207, 1, 0
    %v212 = vsel %vm208, 1, 0
    %v213 = vcvt.s32.f32 %v209
    %v214 = vcvt.s32.f32 %v210
    %v215 = vcvt.s32.f32 %v211
    %v216 = vcvt.s32.f32 %v212
    %v217 = vadd.f32 %v200, %v213
    %v218 = vadd.f32 %v201, %v214
    %v219 = vadd.f32 %v202, %v215
    %v220 = vadd.f32 %v203, %v216
    %v221 = vperm.slane %v26, 3
    %vm222 = vcmp.eq.s32.totalorder %v221, %v30
    %vm223 = vcmp.eq.s32.totalorder %v221, %v31
    %vm224 = vcmp.eq.s32.totalorder %v221, %v32
    %vm225 = vcmp.eq.s32.totalorder %v221, %v33
    %v226 = vsel %vm222, 1, 0
    %v227 = vsel %vm223, 1, 0
    %v228 = vsel %vm224, 1, 0
    %v229 = vsel %vm225, 1, 0
    %v230 = vcvt.s32.f32 %v226
    %v231 = vcvt.s32.f32 %v227
    %v232 = vcvt.s32.f32 %v228
    %v233 = vcvt.s32.f32 %v229
    %v234 = vadd.f32 %v217, %v230
    %v235 = vadd.f32 %v218, %v231
    %v236 = vadd.f32 %v219, %v232
    %v237 = vadd.f32 %v220, %v233
    %v238 = vperm.slane %v26, 4
    %vm239 = vcmp.eq.s32.totalorder %v238, %v30
    %vm240 = vcmp.eq.s32.totalorder %v238, %v31
    %vm241 = vcmp.eq.s32.totalorder %v238, %v32
    %vm242 = vcmp.eq.s32.totalorder %v238, %v33
    %v243 = vsel %vm239, 1, 0
    %v244 = vsel %vm240, 1, 0
    %v245 = vsel %vm241, 1, 0
    %v246 = vsel %vm242, 1, 0
    %v247 = vcvt.s32.f32 %v243
    %v248 = vcvt.s32.f32 %v244
    %v249 = vcvt.s32.f32 %v245
    %v250 = vcvt.s32.f32 %v246
    %v251 = vadd.f32 %v234, %v247
    %v252 = vadd.f32 %v235, %v248
    %v253 = vadd.f32 %v236, %v249
    %v254 = vadd.f32 %v237, %v250
    %v255 = vperm.slane %v26, 5
    %vm256 = vcmp.eq.s32.totalorder %v255, %v30
    %vm257 = vcmp.eq.s32.totalorder %v255, %v31
    %vm258 = vcmp.eq.s32.totalorder %v255, %v32
    %vm259 = vcmp.eq.s32.totalorder %v255, %v33
    %v260 = vsel %vm256, 1, 0
    %v261 = vsel %vm257, 1, 0
    %v262 = vsel %vm258, 1, 0
    %v263 = vsel %vm259, 1, 0
    %v264 = vcvt.s32.f32 %v260
    %v265 = vcvt.s32.f32 %v261
    %v266 = vcvt.s32.f32 %v262
    %v267 = vcvt.s32.f32 %v263
    %v268 = vadd.f32 %v251, %v264
    %v269 = vadd.f32 %v252, %v265
    %v270 = vadd.f32 %v253, %v266
    %v271 = vadd.f32 %v254, %v267
    %v272 = vperm.slane %v26, 6
    %vm273 = vcmp.eq.s32.totalorder %v272, %v30
    %vm274 = vcmp.eq.s32.totalorder %v272, %v31
    %vm275 = vcmp.eq.s32.totalorder %v272, %v32
    %vm276 = vcmp.eq.s32.totalorder %v272, %v33
    %v277 = vsel %vm273, 1, 0
    %v278 = vsel %vm274, 1, 0
    %v279 = vsel %vm275, 1, 0
    %v280 = vsel %vm276, 1, 0
    %v281 = vcvt.s32.f32 %v277
    %v282 = vcvt.s32.f32 %v278
    %v283 = vcvt.s32.f32 %v279
    %v284 = vcvt.s32.f32 %v280
    %v285 = vadd.f32 %v268, %v281
    %v286 = vadd.f32 %v269, %v282
    %v287 = vadd.f32 %v270, %v283
    %v288 = vadd.f32 %v271, %v284
    %v289 = vperm.slane %v26, 7
    %vm290 = vcmp.eq.s32.totalorder %v289, %v30
    %vm291 = vcmp.eq.s32.totalorder %v289, %v31
    %vm292 = vcmp.eq.s32.totalorder %v289, %v32
    %vm293 = vcmp.eq.s32.totalorder %v289, %v33
    %v294 = vsel %vm290, 1, 0
    %v295 = vsel %vm291, 1, 0
    %v296 = vsel %vm292, 1, 0
    %v297 = vsel %vm293, 1, 0
    %v298 = vcvt.s32.f32 %v294
    %v299 = vcvt.s32.f32 %v295
    %v300 = vcvt.s32.f32 %v296
    %v301 = vcvt.s32.f32 %v297
    %v302 = vadd.f32 %v285, %v298
    %v303 = vadd.f32 %v286, %v299
    %v304 = vadd.f32 %v287, %v300
    %v305 = vadd.f32 %v288, %v301
    %v306 = vperm.slane %v27, 0
    %vm307 = vcmp.eq.s32.totalorder %v306, %v30
    %vm308 = vcmp.eq.s32.totalorder %v306, %v31
    %vm309 = vcmp.eq.s32.totalorder %v306, %v32
    %vm310 = vcmp.eq.s32.totalorder %v306, %v33
    %v311 = vsel %vm307, 1, 0
    %v312 = vsel %vm308, 1, 0
    %v313 = vsel %vm309, 1, 0
    %v314 = vsel %vm310, 1, 0
    %v315 = vcvt.s32.f32 %v311
    %v316 = vcvt.s32.f32 %v312
    %v317 = vcvt.s32.f32 %v313
    %v318 = vcvt.s32.f32 %v314
    %v319 = vadd.f32 %v302, %v315
    %v320 = vadd.f32 %v303, %v316
    %v321 = vadd.f32 %v304, %v317
    %v322 = vadd.f32 %v305, %v318
    %v323 = vperm.slane %v27, 1
    %vm324 = vcmp.eq.s32.totalorder %v323, %v30
    %vm325 = vcmp.eq.s32.totalorder %v323, %v31
    %vm326 = vcmp.eq.s32.totalorder %v323, %v32
    %vm327 = vcmp.eq.s32.totalorder %v323, %v33
    %v328 = vsel %vm324, 1, 0
    %v329 = vsel %vm325, 1, 0
    %v330 = vsel %vm326, 1, 0
    %v331 = vsel %vm327, 1, 0
    %v332 = vcvt.s32.f32 %v328
    %v333 = vcvt.s32.f32 %v329
    %v334 = vcvt.s32.f32 %v330
    %v335 = vcvt.s32.f32 %v331
    %v336 = vadd.f32 %v319, %v332
    %v337 = vadd.f32 %v320, %v333
    %v338 = vadd.f32 %v321, %v334
    %v339 = vadd.f32 %v322, %v335
    %v340 = vperm.slane %v27, 2
    %vm341 = vcmp.eq.s32.totalorder %v340, %v30
    %vm342 = vcmp.eq.s32.totalorder %v340, %v31
    %vm343 = vcmp.eq.s32.totalorder %v340, %v32
    %vm344 = vcmp.eq.s32.totalorder %v340, %v33
    %v345 = vsel %vm341, 1, 0
    %v346 = vsel %vm342, 1, 0
    %v347 = vsel %vm343, 1, 0
    %v348 = vsel %vm344, 1, 0
    %v349 = vcvt.s32.f32 %v345
    %v350 = vcvt.s32.f32 %v346
    %v351 = vcvt.s32.f32 %v347
    %v352 = vcvt.s32.f32 %v348
    %v353 = vadd.f32 %v336, %v349
    %v354 = vadd.f32 %v337, %v350
    %v355 = vadd.f32 %v338, %v351
    %v356 = vadd.f32 %v339, %v352
    %v357 = vperm.slane %v27, 3
    %vm358 = vcmp.eq.s32.totalorder %v357, %v30
    %vm359 = vcmp.eq.s32.totalorder %v357, %v31
    %vm360 = vcmp.eq.s32.totalorder %v357, %v32
    %vm361 = vcmp.eq.s32.totalorder %v357, %v33
    %v362 = vsel %vm358, 1, 0
    %v363 = vsel %vm359, 1, 0
    %v364 = vsel %vm360, 1, 0
    %v365 = vsel %vm361, 1, 0
    %v366 = vcvt.s32.f32 %v362
    %v367 = vcvt.s32.f32 %v363
    %v368 = vcvt.s32.f32 %v364
    %v369 = vcvt.s32.f32 %v365
    %v370 = vadd.f32 %v353, %v366
    %v371 = vadd.f32 %v354, %v367
    %v372 = vadd.f32 %v355, %v368
    %v373 = vadd.f32 %v356, %v369
    %v374 = vperm.slane %v27, 4
    %vm375 = vcmp.eq.s32.totalorder %v374, %v30
    %vm376 = vcmp.eq.s32.totalorder %v374, %v31
    %vm377 = vcmp.eq.s32.totalorder %v374, %v32
    %vm378 = vcmp.eq.s32.totalorder %v374, %v33
    %v379 = vsel %vm375, 1, 0
    %v380 = vsel %vm376, 1, 0
    %v381 = vsel %vm377, 1, 0
    %v382 = vsel %vm378, 1, 0
    %v383 = vcvt.s32.f32 %v379
    %v384 = vcvt.s32.f32 %v380
    %v385 = vcvt.s32.f32 %v381
    %v386 = vcvt.s32.f32 %v382
    %v387 = vadd.f32 %v370, %v383
    %v388 = vadd.f32 %v371, %v384
    %v389 = vadd.f32 %v372, %v385
    %v390 = vadd.f32 %v373, %v386
    %v391 = vperm.slane %v27, 5
    %vm392 = vcmp.eq.s32.totalorder %v391, %v30
    %vm393 = vcmp.eq.s32.totalorder %v391, %v31
    %vm394 = vcmp.eq.s32.totalorder %v391, %v32
    %vm395 = vcmp.eq.s32.totalorder %v391, %v33
    %v396 = vsel %vm392, 1, 0
    %v397 = vsel %vm393, 1, 0
    %v398 = vsel %vm394, 1, 0
    %v399 = vsel %vm395, 1, 0
    %v400 = vcvt.s32.f32 %v396
    %v401 = vcvt.s32.f32 %v397
    %v402 = vcvt.s32.f32 %v398
    %v403 = vcvt.s32.f32 %v399
    %v404 = vadd.f32 %v387, %v400
    %v405 = vadd.f32 %v388, %v401
    %v406 = vadd.f32 %v389, %v402
    %v407 = vadd.f32 %v390, %v403
    %v408 = vperm.slane %v27, 6
    %vm409 = vcmp.eq.s32.totalorder %v408, %v30
    %vm410 = vcmp.eq.s32.totalorder %v408, %v31
    %vm411 = vcmp.eq.s32.totalorder %v408, %v32
    %vm412 = vcmp.eq.s32.totalorder %v408, %v33
    %v413 = vsel %vm409, 1, 0
    %v414 = vsel %vm410, 1, 0
    %v415 = vsel %vm411, 1, 0
    %v416 = vsel %vm412, 1, 0
    %v417 = vcvt.s32.f32 %v413
    %v418 = vcvt.s32.f32 %v414
    %v419 = vcvt.s32.f32 %v415
    %v420 = vcvt.s32.f32 %v416
    %v421 = vadd.f32 %v404, %v417
    %v422 = vadd.f32 %v405, %v418
    %v423 = vadd.f32 %v406, %v419
    %v424 = vadd.f32 %v407, %v420
    %v425 = vperm.slane %v27, 7
    %vm426 = vcmp.eq.s32.totalorder %v425, %v30
    %vm427 = vcmp.eq.s32.totalorder %v425, %v31
    %vm428 = vcmp.eq.s32.totalorder %v425, %v32
    %vm429 = vcmp.eq.s32.totalorder %v425, %v33
    %v430 = vsel %vm426, 1, 0
    %v431 = vsel %vm427, 1, 0
    %v432 = vsel %vm428, 1, 0
    %v433 = vsel %vm429, 1, 0
    %v434 = vcvt.s32.f32 %v430
    %v435 = vcvt.s32.f32 %v431
    %v436 = vcvt.s32.f32 %v432
    %v437 = vcvt.s32.f32 %v433
    %v438 = vadd.f32 %v421, %v434
    %v439 = vadd.f32 %v422, %v435
    %v440 = vadd.f32 %v423, %v436
    %v441 = vadd.f32 %v424, %v437
    %v442 = vperm.slane %v28, 0
    %vm443 = vcmp.eq.s32.totalorder %v442, %v30
    %vm444 = vcmp.eq.s32.totalorder %v442, %v31
    %vm445 = vcmp.eq.s32.totalorder %v442, %v32
    %vm446 = vcmp.eq.s32.totalorder %v442, %v33
    %v447 = vsel %vm443, 1, 0
    %v448 = vsel %vm444, 1, 0
    %v449 = vsel %vm445, 1, 0
    %v450 = vsel %vm446, 1, 0
    %v451 = vcvt.s32.f32 %v447
    %v452 = vcvt.s32.f32 %v448
    %v453 = vcvt.s32.f32 %v449
    %v454 = vcvt.s32.f32 %v450
    %v455 = vadd.f32 %v438, %v451
    %v456 = vadd.f32 %v439, %v452
    %v457 = vadd.f32 %v440, %v453
    %v458 = vadd.f32 %v441, %v454
    %v459 = vperm.slane %v28, 1
    %vm460 = vcmp.eq.s32.totalorder %v459, %v30
    %vm461 = vcmp.eq.s32.totalorder %v459, %v31
    %vm462 = vcmp.eq.s32.totalorder %v459, %v32
    %vm463 = vcmp.eq.s32.totalorder %v459, %v33
    %v464 = vsel %vm460, 1, 0
    %v465 = vsel %vm461, 1, 0
    %v466 = vsel %vm462, 1, 0
    %v467 = vsel %vm463, 1, 0
    %v468 = vcvt.s32.f32 %v464
    %v469 = vcvt.s32.f32 %v465
    %v470 = vcvt.s32.f32 %v466
    %v471 = vcvt.s32.f32 %v467
    %v472 = vadd.f32 %v455, %v468
    %v473 = vadd.f32 %v456, %v469
    %v474 = vadd.f32 %v457, %v470
    %v475 = vadd.f32 %v458, %v471
    %v476 = vperm.slane %v28, 2
    %vm477 = vcmp.eq.s32.totalorder %v476, %v30
    %vm478 = vcmp.eq.s32.totalorder %v476, %v31
    %vm479 = vcmp.eq.s32.totalorder %v476, %v32
    %vm480 = vcmp.eq.s32.totalorder %v476, %v33
    %v481 = vsel %vm477, 1, 0
    %v482 = vsel %vm478, 1, 0
    %v483 = vsel %vm479, 1, 0
    %v484 = vsel %vm480, 1, 0
    %v485 = vcvt.s32.f32 %v481
    %v486 = vcvt.s32.f32 %v482
    %v487 = vcvt.s32.f32 %v483
    %v488 = vcvt.s32.f32 %v484
    %v489 = vadd.f32 %v472, %v485
    %v490 = vadd.f32 %v473, %v486
    %v491 = vadd.f32 %v474, %v487
    %v492 = vadd.f32 %v475, %v488
    %v493 = vperm.slane %v28, 3
    %vm494 = vcmp.eq.s32.totalorder %v493, %v30
    %vm495 = vcmp.eq.s32.totalorder %v493, %v31
    %vm496 = vcmp.eq.s32.totalorder %v493, %v32
    %vm497 = vcmp.eq.s32.totalorder %v493, %v33
    %v498 = vsel %vm494, 1, 0
    %v499 = vsel %vm495, 1, 0
    %v500 = vsel %vm496, 1, 0
    %v501 = vsel %vm497, 1, 0
    %v502 = vcvt.s32.f32 %v498
    %v503 = vcvt.s32.f32 %v499
    %v504 = vcvt.s32.f32 %v500
    %v505 = vcvt.s32.f32 %v501
    %v506 = vadd.f32 %v489, %v502
    %v507 = vadd.f32 %v490, %v503
    %v508 = vadd.f32 %v491, %v504
    %v509 = vadd.f32 %v492, %v505
    %v510 = vperm.slane %v28, 4
    %vm511 = vcmp.eq.s32.totalorder %v510, %v30
    %vm512 = vcmp.eq.s32.totalorder %v510, %v31
    %vm513 = vcmp.eq.s32.totalorder %v510, %v32
    %vm514 = vcmp.eq.s32.totalorder %v510, %v33
    %v515 = vsel %vm511, 1, 0
    %v516 = vsel %vm512, 1, 0
    %v517 = vsel %vm513, 1, 0
    %v518 = vsel %vm514, 1, 0
    %v519 = vcvt.s32.f32 %v515
    %v520 = vcvt.s32.f32 %v516
    %v521 = vcvt.s32.f32 %v517
    %v522 = vcvt.s32.f32 %v518
    %v523 = vadd.f32 %v506, %v519
    %v524 = vadd.f32 %v507, %v520
    %v525 = vadd.f32 %v508, %v521
    %v526 = vadd.f32 %v509, %v522
    %v527 = vperm.slane %v28, 5
    %vm528 = vcmp.eq.s32.totalorder %v527, %v30
    %vm529 = vcmp.eq.s32.totalorder %v527, %v31
    %vm530 = vcmp.eq.s32.totalorder %v527, %v32
    %vm531 = vcmp.eq.s32.totalorder %v527, %v33
    %v532 = vsel %vm528, 1, 0
    %v533 = vsel %vm529, 1, 0
    %v534 = vsel %vm530, 1, 0
    %v535 = vsel %vm531, 1, 0
    %v536 = vcvt.s32.f32 %v532
    %v537 = vcvt.s32.f32 %v533
    %v538 = vcvt.s32.f32 %v534
    %v539 = vcvt.s32.f32 %v535
    %v540 = vadd.f32 %v523, %v536
    %v541 = vadd.f32 %v524, %v537
    %v542 = vadd.f32 %v525, %v538
    %v543 = vadd.f32 %v526, %v539
    %v544 = vperm.slane %v28, 6
    %vm545 = vcmp.eq.s32.totalorder %v544, %v30
    %vm546 = vcmp.eq.s32.totalorder %v544, %v31
    %vm547 = vcmp.eq.s32.totalorder %v544, %v32
    %vm548 = vcmp.eq.s32.totalorder %v544, %v33
    %v549 = vsel %vm545, 1, 0
    %v550 = vsel %vm546, 1, 0
    %v551 = vsel %vm547, 1, 0
    %v552 = vsel %vm548, 1, 0
    %v553 = vcvt.s32.f32 %v549
    %v554 = vcvt.s32.f32 %v550
    %v555 = vcvt.s32.f32 %v551
    %v556 = vcvt.s32.f32 %v552
    %v557 = vadd.f32 %v540, %v553
    %v558 = vadd.f32 %v541, %v554
    %v559 = vadd.f32 %v542, %v555
    %v560 = vadd.f32 %v543, %v556
    %v561 = vperm.slane %v28, 7
    %vm562 = vcmp.eq.s32.totalorder %v561, %v30
    %vm563 = vcmp.eq.s32.totalorder %v561, %v31
    %vm564 = vcmp.eq.s32.totalorder %v561, %v32
    %vm565 = vcmp.eq.s32.totalorder %v561, %v33
    %v566 = vsel %vm562, 1, 0
    %v567 = vsel %vm563, 1, 0
    %v568 = vsel %vm564, 1, 0
    %v569 = vsel %vm565, 1, 0
    %v570 = vcvt.s32.f32 %v566
    %v571 = vcvt.s32.f32 %v567
    %v572 = vcvt.s32.f32 %v568
    %v573 = vcvt.s32.f32 %v569
    %v574 = vadd.f32 %v557, %v570
    %v575 = vadd.f32 %v558, %v571
    %v576 = vadd.f32 %v559, %v572
    %v577 = vadd.f32 %v560, %v573
    %v578 = vld [vmem:[%s1] sm:$0xff]
    %v579 = vld [vmem:[%s1 + $0x8] sm:$0xff]
    %v580 = vld [vmem:[%s1 + $0x10] sm:$0xff]
    %v581 = vld [vmem:[%s1 + $0x18] sm:$0xff]
    %vm582 = vcmask 261120
    %v584 = vsel %vm582, %v578, 0
    %v587 = vsel %vm582, %v579, 0
    %v590 = vsel %vm582, %v580, 0
    %v593 = vsel %vm582, %v581, 0
    %595 = vmatpush.msra.mxu0 0.0
    %596 = vmatpush.msra.mxu0 0.0
    %597 = vmatpush.msra.mxu0 0.0
    %598 = vmatpush.msra.mxu0 0.0
    %599 = vmatpush.msra.mxu0 0.0
    %600 = vmatpush.msra.mxu0 0.0
    %601 = vmatpush.msra.mxu0 0.0
    %602 = vmatpush.msra.mxu0 0.0
    %603 = vmatpush.msra.mxu0 0.0
    %604 = vmatpush.msra.mxu0 0.0
    %605 = vmatpush.msra.mxu0 0.0
    %606 = vmatpush.msra.mxu0 0.0
    %607 = vmatpush.msra.mxu0 %v577
    %608 = vmatpush.msra.mxu0 %v576
    %609 = vmatpush.msra.mxu0 %v575
    %610 = vmatpush.msra.mxu0 %v574
    %611 = vmatmul.f32.gmra.mxu0 %v584
    %v612 = vpop.f32.mrf.mxu0
    %v613 = vadd.f32 0.0, %v612
    %614 = vmatmul.f32.gmra.mxu0 %v587
    %v615 = vpop.f32.mrf.mxu0
    %v616 = vadd.f32 0.0, %v615
    %617 = vmatmul.f32.gmra.mxu0 %v590
    %v618 = vpop.f32.mrf.mxu0
    %v619 = vadd.f32 0.0, %v618
    %620 = vmatmul.f32.gmra.mxu0 %v593
    %v621 = vpop.f32.mrf.mxu0
    %v622 = vadd.f32 0.0, %v621
    %623 = vdwg.mxu0
    %v624 = vmul.f32 %v613, %v613
    %v625 = vmul.f32 %v616, %v616
    %vm626 = vcmask 64512
    %v627 = vsel %vm626, %v624, 0.0
    %v628 = vsel %vm626, %v625, 0.0
    %v629 = vadd.f32 %v627, %v628
    %v630 = vrot.slane %v629, 4
    %v631 = vadd.f32 %v629, %v630
    %v632 = vrot.slane %v631, 2
    %v633 = vadd.f32 %v631, %v632
    %v634 = vrot.slane %v633, 1
    %v635 = vadd.f32 %v633, %v634
    %vm636 = vcmask 57344
    %637 = vst.msk [vmem:[#allocation3] sm:$0x1] %vm636, %v635
    %v638 = vsel %vm626, %v619, 0.0
    %v639 = vsel %vm626, %v622, 0.0
    %v640 = vadd.f32 %v638, %v639
    %v641 = vrot.slane %v640, 4
    %v642 = vadd.f32 %v640, %v641
    %v643 = vrot.slane %v642, 2
    %v644 = vadd.f32 %v642, %v643
    %v645 = vrot.slane %v644, 1
    %v646 = vadd.f32 %v644, %v645
    %647 = vst.msk [vmem:[#allocation5] sm:$0x1] %vm636, %v646
    %v648 = vcvt.s32.f32 %v25
    %v649 = vcvt.s32.f32 %v26
    %v650 = vcvt.s32.f32 %v27
    %v651 = vcvt.s32.f32 %v28
    %v652 = vld [vmem:[%s2] sm:$0xff]
    %v653 = vld [vmem:[%s2 + $0x8] sm:$0xff]
    %v654 = vld [vmem:[%s2 + $0x10] sm:$0xff]
    %v655 = vld [vmem:[%s2 + $0x18] sm:$0xff]
    %657 = vset.pattern.permute.xlu0 0
    %658 = vperm.xlu0 %657, %v652
    %v659 = vpop.permute.xlu0 %658
    %662 = vset.pattern.permute.xlu0 0
    %663 = vperm.xlu0 %662, %v653
    %v664 = vpop.permute.xlu0 %663
    %667 = vset.pattern.permute.xlu0 0
    %668 = vperm.xlu0 %667, %v654
    %v669 = vpop.permute.xlu0 %668
    %672 = vset.pattern.permute.xlu0 0
    %673 = vperm.xlu0 %672, %v655
    %v674 = vpop.permute.xlu0 %673
    %v676 = vmul.f32 %v648, %v659
    %v677 = vmul.f32 %v649, %v664
    %v678 = vmul.f32 %v650, %v669
    %v679 = vmul.f32 %v651, %v674
    %v680 = vsel %vm626, %v676, 0.0
    %v681 = vsel %vm626, %v677, 0.0
    %v682 = vadd.f32 %v680, %v681
    %v683 = vsel %vm626, %v678, 0.0
    %v684 = vadd.f32 %v682, %v683
    %v685 = vsel %vm626, %v679, 0.0
    %v686 = vadd.f32 %v684, %v685
    %v687 = vrot.slane %v686, 4
    %v688 = vadd.f32 %v686, %v687
    %v689 = vrot.slane %v688, 2
    %v690 = vadd.f32 %v688, %v689
    %v691 = vrot.slane %v690, 1
    %v692 = vadd.f32 %v690, %v691
    %s693 = sld [smem:[#allocation2]]
    %v694 = vstv %s693
    %v695 = vadd.f32 %v692, %v694
    %696 = vst.msk [vmem:[#allocation7] sm:$0x1] %vm636, %v695
    %v697 = vlaneseq
    %v698 = vand.u32 %v697, 127
    %s699 = smul.u32 0, 8
    %v700 = vstv %s699
    %v701 = vadd.s32 %v700, %v698
    %vm702 = vcmp.lt.s32.totalorder %v701, 8
    %v703 = vsel %vm702, %v624, 0.0
    %v704 = vsel %vm702, %v625, 0.0
    %v705 = vsel %vm626, %v703, -inf
    %706 = vmax.xlane.f32.xlu0 %v705
    %v707 = vpop.xlane.xlu0 %706
    %v708 = vsel %vm626, %v704, -inf
    %709 = vmax.xlane.f32.xlu0 %v708
    %v710 = vpop.xlane.xlu0 %709
    %v711 = vmax.f32 %v707, %v710
    %v712 = vrot.slane %v711, 4
    %v713 = vmax.f32 %v711, %v712
    %v714 = vrot.slane %v713, 2
    %v715 = vmax.f32 %v713, %v714
    %v716 = vrot.slane %v715, 1
    %v717 = vmax.f32 %v715, %v716
    %v718 = vsel %vm702, %v619, 0.0
    %v719 = vsel %vm702, %v622, 0.0
    %v720 = vsel %vm626, %v718, -inf
    %721 = vmax.xlane.f32.xlu0 %v720
    %v722 = vpop.xlane.xlu0 %721
    %v723 = vsel %vm626, %v719, -inf
    %724 = vmax.xlane.f32.xlu0 %v723
    %v725 = vpop.xlane.xlu0 %724
    %v726 = vmax.f32 %v722, %v725
    %v727 = vrot.slane %v726, 4
    %v728 = vmax.f32 %v726, %v727
    %v729 = vrot.slane %v728, 2
    %v730 = vmax.f32 %v728, %v729
    %v731 = vrot.slane %v730, 1
    %v732 = vmax.f32 %v730, %v731
    %vm733 = vcmask 1040384
    %v734 = vsel %vm733, %v717, %v732
    %p735 = scmp.eq.s32.totalorder 0, 0
    // Predicated region
    $region18: #{tpu_custom_call.1} parent=1 // pred_check
      %p736 = pneg %p735
    $region19: #{tpu_custom_call.1} parent=1 // pred_check_branch
      %738 = sbr.rel (%p736) target = $region21
    $region20: #{tpu_custom_call.1} parent=1 // pred_region
      %739 = vst [vmem:[#allocation8] sm:$0x3] %v734
    $region21: #{tpu_custom_call.1} parent=1 // pred_fallthru
      _
    %p740 = scmp.gt.s32.totalorder 0, 0
    // Predicated region
    $region22: #{tpu_custom_call.1} parent=1 // pred_check
      %p741 = pneg %p740
    $region23: #{tpu_custom_call.1} parent=1 // pred_check_branch
      %743 = sbr.rel (%p741) target = $region25
    $region24: #{tpu_custom_call.1} parent=1 // pred_region
      %v744 = vld [vmem:[#allocation8] sm:$0x3]
      %v745 = vmax.f32 %v744, %v734
      %746 = vst [vmem:[#allocation8] sm:$0x3] %v745
    $region25: #{tpu_custom_call.1} parent=1 // pred_fallthru
      _
    // Predicated region
    $region26: #{tpu_custom_call.1} parent=1 // pred_check
      _
    $region27: #{tpu_custom_call.1} parent=1 // pred_check_branch
      %748 = sbr.rel (0) target = $region29
    $region28: #{tpu_custom_call.1} parent=1 // pred_region
      %750 = vsyncadd [#allocation4], 0
      %s752 = sshll.u32 [#allocation3], 4
      %s753 = int_to_ptr.vmem [resolvable:$true] %s752
      %s754 = sshll.u32 %s4, 4
      %s755 = int_to_ptr.hbm [resolvable:$true] %s754
      %757 = dma.vmem_to_hbm [thread:$0]  %s753, 16, %s755, [#allocation4]
    $region29: #{tpu_custom_call.1} parent=1 // pred_fallthru
      _
    // Predicated region
    $region30: #{tpu_custom_call.1} parent=1 // pred_check
      _
    $region31: #{tpu_custom_call.1} parent=1 // pred_check_branch
      %759 = sbr.rel (0) target = $region33
    $region32: #{tpu_custom_call.1} parent=1 // pred_region
      %761 = vsyncadd [#allocation6], 0
      %s763 = sshll.u32 [#allocation5], 4
      %s764 = int_to_ptr.vmem [resolvable:$true] %s763
      %s765 = sshll.u32 %s5, 4
      %s766 = int_to_ptr.hbm [resolvable:$true] %s765
      %768 = dma.vmem_to_hbm [thread:$0]  %s764, 16, %s766, [#allocation6]
    $region33: #{tpu_custom_call.1} parent=1 // pred_fallthru
      _
    // Predicated region
    $region34: #{tpu_custom_call.1} parent=1 // pred_check
      _
    $region35: #{tpu_custom_call.1} parent=1 // pred_check_branch
      %770 = sbr.rel (0) target = $region37
    $region36: #{tpu_custom_call.1} parent=1 // pred_region
      %772 = vsyncadd [#allocation6], 0
      %s774 = sshll.u32 [#allocation7], 4
      %s775 = int_to_ptr.vmem [resolvable:$true] %s774
      %s776 = sshll.u32 %s6, 4
      %s777 = int_to_ptr.hbm [resolvable:$true] %s776
      %779 = dma.vmem_to_hbm [thread:$0]  %s775, 16, %s777, [#allocation6]
    $region37: #{tpu_custom_call.1} parent=1 // pred_fallthru
      _
    // Predicated region
    $region38: #{tpu_custom_call.1} parent=1 // pred_check
      _
    $region39: #{tpu_custom_call.1} parent=1 // pred_check_branch
      %781 = sbr.rel (0) target = $region41
    $region40: #{tpu_custom_call.1} parent=1 // pred_region
      %783 = vsyncadd [#allocation9], 0
      %s785 = sshll.u32 [#allocation8], 4
      %s786 = int_to_ptr.vmem [resolvable:$true] %s785
      %s787 = sshll.u32 %s7, 4
      %s788 = int_to_ptr.hbm [resolvable:$true] %s787
      %790 = dma.vmem_to_hbm [thread:$0]  %s786, 32, %s788, [#allocation9]
    $region41: #{tpu_custom_call.1} parent=1 // pred_fallthru
      _
    // Predicated region
    $region42: #{tpu_custom_call.1} parent=1 // pred_check
      _
    $region43: #{tpu_custom_call.1} parent=1 // pred_check_branch
      %792 = sbr.rel (0) target = $region45
    $region44: #{tpu_custom_call.1} parent=1 // pred_region
      %794 = dma.done [#allocation4], 16
    $region45: #{tpu_custom_call.1} parent=1 // pred_fallthru
      _
    // Predicated region
    $region46: #{tpu_custom_call.1} parent=1 // pred_check
      _
    $region47: #{tpu_custom_call.1} parent=1 // pred_check_branch
      %796 = sbr.rel (0) target = $region49
    $region48: #{tpu_custom_call.1} parent=1 // pred_region
      %798 = dma.done [#allocation6], 16
    $region49: #{tpu_custom_call.1} parent=1 // pred_fallthru
      _
    // Predicated region
    $region50: #{tpu_custom_call.1} parent=1 // pred_check
      _
    $region51: #{tpu_custom_call.1} parent=1 // pred_check_branch
      %800 = sbr.rel (0) target = $region53
    $region52: #{tpu_custom_call.1} parent=1 // pred_region
      %802 = dma.done [#allocation6], 16
    $region53: #{tpu_custom_call.1} parent=1 // pred_fallthru
      _
    // Predicated region
    $region54: #{tpu_custom_call.1} parent=1 // pred_check
      _
    $region55: #{tpu_custom_call.1} parent=1 // pred_check_branch
      %804 = sbr.rel (0) target = $region57
    $region56: #{tpu_custom_call.1} parent=1 // pred_region
      %806 = dma.done [#allocation9], 32
    $region57: #{tpu_custom_call.1} parent=1 // pred_fallthru
      _
    %807 = vsyncpa [#allocation4], 1
    %808 = vsyncpa [#allocation6], 1
    %809 = vsyncpa [#allocation9], 1

</llo_original>
